<compile_context>
chip_gen: v7x
topology: tpu7x:2x2x1
jax: 0.10.0
libtpu: 0.0.40
codegen_flags: <defaults>
</compile_context>

<pallas_src>
import functools
import math

import jax
import jax.numpy as jnp
from jax.experimental import pallas as pl
from jax.experimental.pallas import tpu as pltpu

_MASK_VALUE = -1e30  # large finite negative: exp underflows to exactly 0


def _mha_pool_kernel(q_ref, k_ref, mask_ref, wq_ref, bq_ref, wk_ref, bk_ref,
                     wv_ref, bv_ref, sk_ref, sv_ref, out_ref, attn_ref,
                     *, inv_temp: float):
    f32 = jnp.float32
    bt, _, d_q = q_ref.shape
    _, seq, d_kin = k_ref.shape
    h_dk = wq_ref.shape[1]
    h_dv = wv_ref.shape[1]

    q = q_ref[...].reshape(bt, d_q)                  # (Bt, d_q)
    kflat = k_ref[...].reshape(bt * seq, d_kin)      # (Bt*L, d_kin)

    # Projections: operands stay in their native dtype (bf16 feeds the MXU
    # directly); accumulation forced to f32 via preferred_element_type.
    qs = jnp.dot(q, wq_ref[...], preferred_element_type=f32) \
        + bq_ref[...].astype(f32)                    # (Bt, H*dk)
    qs = qs * inv_temp                               # fold 1/sqrt(dk) once
    ks = jnp.dot(kflat, wk_ref[...], preferred_element_type=f32) \
        + bk_ref[...].astype(f32)                    # (Bt*L, H*dk)
    vs = jnp.dot(kflat, wv_ref[...], preferred_element_type=f32) \
        + bv_ref[...].astype(f32)                    # (Bt*L, H*dv)

    # All-head logits: broadcast-multiply (VPU) then a block-diagonal
    # per-head segment-sum matmul on the MXU: (Bt*L, H*dk) @ (H*dk, H).
    prod = ks.reshape(bt, seq, h_dk) * qs[:, None, :]            # (Bt, L, H*dk)
    logits = jnp.dot(prod.reshape(bt * seq, h_dk), sk_ref[...],
                     preferred_element_type=f32).reshape(bt, seq, -1)  # (Bt, L, H)

    # mask_ref is (Bt, L, 1), nonzero -> position masked out (all heads).
    logits = jnp.where(mask_ref[...] != 0, _MASK_VALUE, logits)

    # Numerically stable softmax over L for all heads at once (nn.Softmax(dim=1)).
    m = jnp.max(logits, axis=1, keepdims=True)                   # (Bt, 1, H)
    e = jnp.exp(logits - m)
    denom = jnp.sum(e, axis=1, keepdims=True)                    # (Bt, 1, H)
    r = pl.reciprocal(denom, approx=True)                        # EUP slot
    r = r * (2.0 - denom * r)                                    # Newton step -> ~f32 exact
    p = e * r                                                    # (Bt, L, H) attention

    # Pooled output: expand head weights across d_v with one small MXU matmul
    # (Bt*L, H) @ (H, H*dv), multiply with vs, reduce over L for all heads.
    p_exp = jnp.dot(p.reshape(bt * seq, -1), sv_ref[...],
                    preferred_element_type=f32)                  # (Bt*L, H*dv)
    pooled = jnp.sum((p_exp * vs).reshape(bt, seq, h_dv), axis=1)  # (Bt, H*dv)

    out_ref[...] = pooled[:, None, :].astype(out_ref.dtype)      # (Bt, 1, H*dv)
    attn_ref[...] = jnp.swapaxes(p, 1, 2).astype(attn_ref.dtype)  # (Bt, H, L)


def multihead_att_pool(q, k, wq, bq, wk, bk, wv, bv, n_head, mask=None,
                       block_b=16):
    """Pallas implementation of MultiheadAttPoolLayer.forward (eval mode).

    q : (B, d_q_original)
    k : (B, L, d_k_original)
    wq/wk/wv : (in_dim, n_head*d) weights (transposed PyTorch Linear weights)
    bq/bk/bv : (n_head*d,) biases
    mask : optional (B, L), nonzero/True -> position masked out
    returns: output (B, n_head*d_v), attn (n_head*B, L)  (same as PyTorch)
    """
    B, d_q = q.shape
    Bk, L, d_kin = k.shape
    assert B == Bk
    h_dk = wq.shape[1]
    h_dv = wv.shape[1]
    d_k = h_dk // n_head
    d_v = h_dv // n_head
    inv_temp = 1.0 / math.sqrt(float(d_k))

    # Batch tile: big enough to amortize per-step overhead / fill MXU rows, but
    # keep >= 2 grid steps when B > 1 so v7x's two TensorCores both get work.
    if B <= 1:
        bt = 1
    else:
        bt = max(1, min(block_b, -(-B // 2)))
    nb = -(-B // bt)
    b_pad = nb * bt

    if mask is None:
        mask_i = jnp.zeros((B, L), dtype=jnp.int32)
    else:
        mask_i = mask.astype(jnp.int32)

    def _pad(a):   # pad batch to a multiple of the tile; padded rows sliced off
        if b_pad == B:
            return a
        return jnp.pad(a, [(0, b_pad - B)] + [(0, 0)] * (a.ndim - 1))

    # Keep tiled batch on a leading dim; last two block dims always equal the
    # full array dims -> (8,128) block constraints trivially satisfied.
    q3 = _pad(q).reshape(b_pad, 1, d_q)
    k3 = _pad(k)
    mask3 = _pad(mask_i).reshape(b_pad, L, 1)
    bq2 = bq.reshape(1, h_dk)
    bk2 = bk.reshape(1, h_dk)
    bv2 = bv.reshape(1, h_dv)

    # Block-diagonal "segment" matrices that vectorize the per-head reductions
    # on the MXU (resident in VMEM, constant index_map).
    sk = (jnp.arange(h_dk)[:, None] // d_k
          == jnp.arange(n_head)[None, :]).astype(jnp.float32)        # (H*dk, H)
    sv = (jnp.arange(n_head)[:, None]
          == jnp.arange(h_dv)[None, :] // d_v).astype(jnp.float32)   # (H, H*dv)

    # Advisory VMEM budget: resident weights (conservatively double-buffered)
    # + double-buffered batch tiles + headroom, clamped to stay legal on
    # v7x's 64 MiB while allowing bigger tiles than the 32 MiB default.
    def _nbytes(a):
        return a.size * a.dtype.itemsize
    resident = sum(_nbytes(a) for a in (wq, wk, wv, bq2, bk2, bv2, sk, sv))
    per_step = (bt * (d_q + L * d_kin) * q.dtype.itemsize
                + bt * L * 4 + bt * (h_dv + n_head * L) * 4)
    vmem_bytes = int(2 * resident + 4 * per_step + (16 << 20))
    vmem_bytes = max(32 << 20, min(vmem_bytes, 64 << 20))

    kernel = functools.partial(_mha_pool_kernel, inv_temp=inv_temp)

    out3, attn_bhl = pl.pallas_call(
        kernel,
        out_shape=(
            jax.ShapeDtypeStruct((b_pad, 1, h_dv), q.dtype),
            jax.ShapeDtypeStruct((b_pad, n_head, L), q.dtype),
        ),
        grid_spec=pltpu.PrefetchScalarGridSpec(
            num_scalar_prefetch=0,
            grid=(nb,),
            in_specs=[
                pl.BlockSpec((bt, 1, d_q), lambda i: (i, 0, 0)),     # q tile
                pl.BlockSpec((bt, L, d_kin), lambda i: (i, 0, 0)),   # k tile
                pl.BlockSpec((bt, L, 1), lambda i: (i, 0, 0)),       # mask tile
                pl.BlockSpec((d_q, h_dk), lambda i: (0, 0)),         # Wq (resident)
                pl.BlockSpec((1, h_dk), lambda i: (0, 0)),           # bq
                pl.BlockSpec((d_kin, h_dk), lambda i: (0, 0)),       # Wk
                pl.BlockSpec((1, h_dk), lambda i: (0, 0)),           # bk
                pl.BlockSpec((d_kin, h_dv), lambda i: (0, 0)),       # Wv
                pl.BlockSpec((1, h_dv), lambda i: (0, 0)),           # bv
                pl.BlockSpec((h_dk, n_head), lambda i: (0, 0)),      # head-sum matrix
                pl.BlockSpec((n_head, h_dv), lambda i: (0, 0)),      # head-expand matrix
            ],
            out_specs=(
                pl.BlockSpec((bt, 1, h_dv), lambda i: (i, 0, 0)),    # pooled output
                pl.BlockSpec((bt, n_head, L), lambda i: (i, 0, 0)),  # attention
            ),
        ),
        compiler_params=pltpu.CompilerParams(
            dimension_semantics=("parallel",),       # megacore-shard batch tiles
            vmem_limit_bytes=vmem_bytes,
        ),
    )(q3, k3, mask3, wq, bq2, wk, bk2, wv, bv2, sk, sv)

    output = out3[:B].reshape(B, h_dv)
    # PyTorch returns attn with shape (n_head*B, L), head-major ordering.
    attn = jnp.transpose(attn_bhl[:B], (1, 0, 2)).reshape(n_head * B, L)
    return output, attn


def _reference(q, k, wq, bq, wk, bk, wv, bv, n_head, mask=None):
    """Pure-JAX port of the PyTorch forward (eval mode) for verification."""
    B, _ = q.shape
    _, L, _ = k.shape
    h_dk = wq.shape[1]
    h_dv = wv.shape[1]
    d_k = h_dk // n_head
    d_v = h_dv // n_head
    qs = (q @ wq + bq).reshape(B, n_head, d_k)
    ks = (k @ wk + bk).reshape(B, L, n_head, d_k)
    vs = (k @ wv + bv).reshape(B, L, n_head, d_v)
    qs = jnp.transpose(qs, (1, 0, 2)).reshape(n_head * B, d_k)
    ks = jnp.transpose(ks, (2, 0, 1, 3)).reshape(n_head * B, L, d_k)
    vs = jnp.transpose(vs, (2, 0, 1, 3)).reshape(n_head * B, L, d_v)
    attn = jnp.sum(qs[:, None, :] * ks, axis=2) / math.sqrt(float(d_k))
    if mask is not None:
        attn = jnp.where(jnp.tile(mask.astype(bool), (n_head, 1)), -jnp.inf, attn)
    attn = jax.nn.softmax(attn, axis=1)
    out = jnp.sum(attn[:, :, None] * vs, axis=1)
    out = out.reshape(n_head, B, d_v).transpose(1, 0, 2).reshape(B, n_head * d_v)
    return out, attn


if __name__ == "__main__":
    # Small shapes consistent with the module: batch=2, seq=8, hidden=32, 4 heads.
    B, L = 2, 8
    d_q_original, d_k_original, n_head = 32, 32, 4
    h_dk = d_k_original          # n_head * d_k
    h_dv = d_k_original          # n_head * d_v
    d_k = h_dk // n_head

    key = jax.random.PRNGKey(0)
    ks_ = jax.random.split(key, 10)
    q = jax.random.normal(ks_[0], (B, d_q_original), dtype=jnp.float32)
    kin = jax.random.normal(ks_[1], (B, L, d_k_original), dtype=jnp.float32)
    wq = jax.random.normal(ks_[2], (d_q_original, h_dk), jnp.float32) * math.sqrt(
        2.0 / (d_q_original + d_k))
    wk = jax.random.normal(ks_[3], (d_k_original, h_dk), jnp.float32) * math.sqrt(
        2.0 / (d_k_original + d_k))
    wv = jax.random.normal(ks_[4], (d_k_original, h_dv), jnp.float32) * math.sqrt(
        2.0 / (d_k_original + d_k))
    bq = jax.random.normal(ks_[5], (h_dk,), jnp.float32) * 0.02
    bk = jax.random.normal(ks_[6], (h_dk,), jnp.float32) * 0.02
    bv = jax.random.normal(ks_[7], (h_dv,), jnp.float32) * 0.02

    # ---- no mask ----
    out, attn = multihead_att_pool(q, kin, wq, bq, wk, bk, wv, bv, n_head, mask=None)
    (out, attn) = jax.block_until_ready((out, attn))
    out_r, attn_r = _reference(q, kin, wq, bq, wk, bk, wv, bv, n_head, mask=None)
    assert out.shape == (B, h_dv) and attn.shape == (n_head * B, L)
    assert bool(jnp.allclose(out, out_r, atol=1e-4, rtol=1e-4)), "output mismatch"
    assert bool(jnp.allclose(attn, attn_r, atol=1e-5, rtol=1e-4)), "attn mismatch"
    assert bool(jnp.allclose(jnp.sum(attn, axis=1), 1.0, atol=1e-5))

    # ---- with mask (last two keys of batch 0, key 1 of batch 1 masked) ----
    mask = jnp.zeros((B, L), dtype=jnp.int32)
    mask = mask.at[0, -2:].set(1).at[1, 1].set(1)
    out_m, attn_m = multihead_att_pool(q, kin, wq, bq, wk, bk, wv, bv, n_head, mask=mask)
    (out_m, attn_m) = jax.block_until_ready((out_m, attn_m))
    out_mr, attn_mr = _reference(q, kin, wq, bq, wk, bk, wv, bv, n_head, mask=mask)
    assert bool(jnp.allclose(out_m, out_mr, atol=1e-4, rtol=1e-4)), "masked output mismatch"
    assert bool(jnp.allclose(attn_m, attn_mr, atol=1e-5, rtol=1e-4)), "masked attn mismatch"
    assert bool(jnp.all(attn_m[0::B, -2:] < 1e-7)), "masked positions not zeroed"

    # ---- non-divisible batch (exercises padding + multi-tile grid path) ----
    B5 = 5
    q5 = jax.random.normal(ks_[8], (B5, d_q_original), dtype=jnp.float32)
    k5 = jax.random.normal(ks_[9], (B5, L, d_k_original), dtype=jnp.float32)
    out5, attn5 = multihead_att_pool(q5, k5, wq, bq, wk, bk, wv, bv, n_head, mask=None)
    (out5, attn5) = jax.block_until_ready((out5, attn5))
    out5_r, attn5_r = _reference(q5, k5, wq, bq, wk, bk, wv, bv, n_head, mask=None)
    assert out5.shape == (B5, h_dv) and attn5.shape == (n_head * B5, L)
    assert bool(jnp.allclose(out5, out5_r, atol=1e-4, rtol=1e-4)), "padded-batch output mismatch"
    assert bool(jnp.allclose(attn5, attn5_r, atol=1e-5, rtol=1e-4)), "padded-batch attn mismatch"

    print("KERNEL_OK")
</pallas_src>

<mosaic_0001>
module attributes {stable_mosaic.version = 11 : i64} {
  func.func @_mha_pool_kernel(%arg0: i32, %arg1: memref<1x1x32xf32, #tpu.memory_space<vmem>>, %arg2: memref<1x8x32xf32, #tpu.memory_space<vmem>>, %arg3: memref<1x8x1xi32, #tpu.memory_space<vmem>>, %arg4: memref<32x32xf32, #tpu.memory_space<vmem>>, %arg5: memref<1x32xf32, #tpu.memory_space<vmem>>, %arg6: memref<32x32xf32, #tpu.memory_space<vmem>>, %arg7: memref<1x32xf32, #tpu.memory_space<vmem>>, %arg8: memref<32x32xf32, #tpu.memory_space<vmem>>, %arg9: memref<1x32xf32, #tpu.memory_space<vmem>>, %arg10: memref<32x4xf32, #tpu.memory_space<vmem>>, %arg11: memref<4x32xf32, #tpu.memory_space<vmem>>, %arg12: memref<1x1x32xf32, #tpu.memory_space<vmem>>, %arg13: memref<1x4x8xf32, #tpu.memory_space<vmem>>) attributes {dimension_semantics = [#tpu.dimension_semantics<parallel>], iteration_bounds = array<i64: 2>, scalar_prefetch = 0 : i64, scratch_operands = 0 : i64, tpu.core_type = #tpu.core_type<tc>, window_params = [{transform_indices = @transform_0, window_bounds = array<i64: 1, 1, 32>}, {transform_indices = @transform_1, window_bounds = array<i64: 1, 8, 32>}, {transform_indices = @transform_2, window_bounds = array<i64: 1, 8, 1>}, {pipeline_mode = #tpu.pipeline_mode<synchronous>, transform_indices = @transform_3, window_bounds = array<i64: 32, 32>}, {pipeline_mode = #tpu.pipeline_mode<synchronous>, transform_indices = @transform_4, window_bounds = array<i64: 1, 32>}, {pipeline_mode = #tpu.pipeline_mode<synchronous>, transform_indices = @transform_5, window_bounds = array<i64: 32, 32>}, {pipeline_mode = #tpu.pipeline_mode<synchronous>, transform_indices = @transform_6, window_bounds = array<i64: 1, 32>}, {pipeline_mode = #tpu.pipeline_mode<synchronous>, transform_indices = @transform_7, window_bounds = array<i64: 32, 32>}, {pipeline_mode = #tpu.pipeline_mode<synchronous>, transform_indices = @transform_8, window_bounds = array<i64: 1, 32>}, {pipeline_mode = #tpu.pipeline_mode<synchronous>, transform_indices = @transform_9, window_bounds = array<i64: 32, 4>}, {pipeline_mode = #tpu.pipeline_mode<synchronous>, transform_indices = @transform_10, window_bounds = array<i64: 4, 32>}, {transform_indices = @transform_11, window_bounds = array<i64: 1, 1, 32>}, {transform_indices = @transform_12, window_bounds = array<i64: 1, 4, 8>}]} {
    %c0 = arith.constant 0 : index
    %c0_0 = arith.constant 0 : index
    %c0_1 = arith.constant 0 : index
    %0 = vector.load %arg1[%c0, %c0_0, %c0_1] : memref<1x1x32xf32, #tpu.memory_space<vmem>>, vector<1x1x32xf32>
    %1 = vector.shape_cast %0 : vector<1x1x32xf32> to vector<1x32xf32>
    %c0_2 = arith.constant 0 : index
    %c0_3 = arith.constant 0 : index
    %c0_4 = arith.constant 0 : index
    %2 = vector.load %arg2[%c0_2, %c0_3, %c0_4] : memref<1x8x32xf32, #tpu.memory_space<vmem>>, vector<1x8x32xf32>
    %3 = vector.shape_cast %2 : vector<1x8x32xf32> to vector<8x32xf32>
    %c0_5 = arith.constant 0 : index
    %c0_6 = arith.constant 0 : index
    %4 = vector.load %arg4[%c0_5, %c0_6] : memref<32x32xf32, #tpu.memory_space<vmem>>, vector<32x32xf32>
    %cst = arith.constant dense<0.000000e+00> : vector<1x32xf32>
    %5 = tpu.matmul %1, %4, %cst {dimension_numbers = #tpu.dot_dimension_numbers<[1], [0], [0], [1], [0, 0, 1, 1], [], []>} : vector<1x32xf32>, vector<32x32xf32>, vector<1x32xf32> -> vector<1x32xf32>
    %c0_7 = arith.constant 0 : index
    %c0_8 = arith.constant 0 : index
    %6 = vector.load %arg5[%c0_7, %c0_8] : memref<1x32xf32, #tpu.memory_space<vmem>>, vector<1x32xf32>
    %7 = arith.addf %5, %6 : vector<1x32xf32>
    %cst_9 = arith.constant 0.353553385 : f32
    %8 = vector.broadcast %cst_9 : f32 to vector<1x32xf32>
    %9 = arith.mulf %7, %8 : vector<1x32xf32>
    %c0_10 = arith.constant 0 : index
    %c0_11 = arith.constant 0 : index
    %10 = vector.load %arg6[%c0_10, %c0_11] : memref<32x32xf32, #tpu.memory_space<vmem>>, vector<32x32xf32>
    %cst_12 = arith.constant dense<0.000000e+00> : vector<8x32xf32>
    %11 = tpu.matmul %3, %10, %cst_12 {dimension_numbers = #tpu.dot_dimension_numbers<[1], [0], [0], [1], [0, 0, 1, 1], [], []>} : vector<8x32xf32>, vector<32x32xf32>, vector<8x32xf32> -> vector<8x32xf32>
    %c0_13 = arith.constant 0 : index
    %c0_14 = arith.constant 0 : index
    %12 = vector.load %arg7[%c0_13, %c0_14] : memref<1x32xf32, #tpu.memory_space<vmem>>, vector<1x32xf32>
    %13 = vector.broadcast %12 : vector<1x32xf32> to vector<8x32xf32>
    %14 = arith.addf %11, %13 : vector<8x32xf32>
    %c0_15 = arith.constant 0 : index
    %c0_16 = arith.constant 0 : index
    %15 = vector.load %arg8[%c0_15, %c0_16] : memref<32x32xf32, #tpu.memory_space<vmem>>, vector<32x32xf32>
    %cst_17 = arith.constant dense<0.000000e+00> : vector<8x32xf32>
    %16 = tpu.matmul %3, %15, %cst_17 {dimension_numbers = #tpu.dot_dimension_numbers<[1], [0], [0], [1], [0, 0, 1, 1], [], []>} : vector<8x32xf32>, vector<32x32xf32>, vector<8x32xf32> -> vector<8x32xf32>
    %c0_18 = arith.constant 0 : index
    %c0_19 = arith.constant 0 : index
    %17 = vector.load %arg9[%c0_18, %c0_19] : memref<1x32xf32, #tpu.memory_space<vmem>>, vector<1x32xf32>
    %18 = vector.broadcast %17 : vector<1x32xf32> to vector<8x32xf32>
    %19 = arith.addf %16, %18 : vector<8x32xf32>
    %20 = vector.shape_cast %14 : vector<8x32xf32> to vector<1x8x32xf32>
    %21 = vector.shape_cast %9 : vector<1x32xf32> to vector<1x1x32xf32>
    %22 = vector.broadcast %21 : vector<1x1x32xf32> to vector<1x8x32xf32>
    %23 = arith.mulf %20, %22 : vector<1x8x32xf32>
    %24 = vector.shape_cast %23 : vector<1x8x32xf32> to vector<8x32xf32>
    %c0_20 = arith.constant 0 : index
    %c0_21 = arith.constant 0 : index
    %25 = vector.load %arg10[%c0_20, %c0_21] : memref<32x4xf32, #tpu.memory_space<vmem>>, vector<32x4xf32>
    %cst_22 = arith.constant dense<0.000000e+00> : vector<8x4xf32>
    %26 = tpu.matmul %24, %25, %cst_22 {dimension_numbers = #tpu.dot_dimension_numbers<[1], [0], [0], [1], [0, 0, 1, 1], [], []>} : vector<8x32xf32>, vector<32x4xf32>, vector<8x4xf32> -> vector<8x4xf32>
    %27 = vector.shape_cast %26 : vector<8x4xf32> to vector<1x8x4xf32>
    %c0_23 = arith.constant 0 : index
    %c0_24 = arith.constant 0 : index
    %c0_25 = arith.constant 0 : index
    %28 = vector.load %arg3[%c0_23, %c0_24, %c0_25] : memref<1x8x1xi32, #tpu.memory_space<vmem>>, vector<1x8x1xi32>
    %c0_i32 = arith.constant 0 : i32
    %29 = vector.broadcast %c0_i32 : i32 to vector<1x8x1xi32>
    %30 = arith.cmpi ne, %28, %29 : vector<1x8x1xi32>
    %cst_26 = arith.constant -1.000000e+30 : f32
    %31 = vector.shape_cast %30 : vector<1x8x1xi1> to vector<1x8x1xi1>
    %32 = vector.broadcast %31 : vector<1x8x1xi1> to vector<1x8x4xi1>
    %33 = vector.broadcast %cst_26 : f32 to vector<1x8x4xf32>
    %34 = arith.select %32, %33, %27 : vector<1x8x4xi1>, vector<1x8x4xf32>
    %cst_27 = arith.constant dense<0xFF800000> : vector<1x4xf32>
    %35 = vector.multi_reduction <maximumf>, %34, %cst_27 [1] : vector<1x8x4xf32> to vector<1x4xf32>
    %36 = vector.shape_cast %35 : vector<1x4xf32> to vector<1x1x4xf32>
    %37 = vector.broadcast %36 : vector<1x1x4xf32> to vector<1x8x4xf32>
    %38 = arith.subf %34, %37 : vector<1x8x4xf32>
    %39 = math.exp %38 : vector<1x8x4xf32>
    %cst_28 = arith.constant dense<0.000000e+00> : vector<1x4xf32>
    %40 = vector.multi_reduction <add>, %39, %cst_28 [1] : vector<1x8x4xf32> to vector<1x4xf32>
    %41 = vector.shape_cast %40 : vector<1x4xf32> to vector<1x1x4xf32>
    %42 = tpu.reciprocal %41 {approx = true} : vector<1x1x4xf32> -> vector<1x1x4xf32>
    %43 = arith.mulf %41, %42 : vector<1x1x4xf32>
    %cst_29 = arith.constant 2.000000e+00 : f32
    %44 = vector.broadcast %cst_29 : f32 to vector<1x1x4xf32>
    %45 = arith.subf %44, %43 : vector<1x1x4xf32>
    %46 = arith.mulf %42, %45 : vector<1x1x4xf32>
    %47 = vector.broadcast %46 : vector<1x1x4xf32> to vector<1x8x4xf32>
    %48 = arith.mulf %39, %47 : vector<1x8x4xf32>
    %49 = vector.shape_cast %48 : vector<1x8x4xf32> to vector<8x4xf32>
    %c0_30 = arith.constant 0 : index
    %c0_31 = arith.constant 0 : index
    %50 = vector.load %arg11[%c0_30, %c0_31] : memref<4x32xf32, #tpu.memory_space<vmem>>, vector<4x32xf32>
    %cst_32 = arith.constant dense<0.000000e+00> : vector<8x32xf32>
    %51 = tpu.matmul %49, %50, %cst_32 {dimension_numbers = #tpu.dot_dimension_numbers<[1], [0], [0], [1], [0, 0, 1, 1], [], []>} : vector<8x4xf32>, vector<4x32xf32>, vector<8x32xf32> -> vector<8x32xf32>
    %52 = arith.mulf %51, %19 : vector<8x32xf32>
    %53 = vector.shape_cast %52 : vector<8x32xf32> to vector<1x8x32xf32>
    %cst_33 = arith.constant dense<0.000000e+00> : vector<1x32xf32>
    %54 = vector.multi_reduction <add>, %53, %cst_33 [1] : vector<1x8x32xf32> to vector<1x32xf32>
    %55 = vector.shape_cast %54 : vector<1x32xf32> to vector<1x1x32xf32>
    %c0_34 = arith.constant 0 : index
    %c0_35 = arith.constant 0 : index
    %c0_36 = arith.constant 0 : index
    %56 = vector.load %arg12[%c0_34, %c0_35, %c0_36] : memref<1x1x32xf32, #tpu.memory_space<vmem>>, vector<1x1x32xf32>
    tpu.vector_store %arg12[%c0_34, %c0_35, %c0_36], %55 {strides = array<i32>} : memref<1x1x32xf32, #tpu.memory_space<vmem>>, vector<1x1x32xf32>,
    %57 = tpu.transpose %48, [0, 2, 1] : vector<1x8x4xf32> -> vector<1x4x8xf32>
    %c0_37 = arith.constant 0 : index
    %c0_38 = arith.constant 0 : index
    %c0_39 = arith.constant 0 : index
    %58 = vector.load %arg13[%c0_37, %c0_38, %c0_39] : memref<1x4x8xf32, #tpu.memory_space<vmem>>, vector<1x4x8xf32>
    tpu.vector_store %arg13[%c0_37, %c0_38, %c0_39], %57 {strides = array<i32>} : memref<1x4x8xf32, #tpu.memory_space<vmem>>, vector<1x4x8xf32>,
    return
  }
  func.func @transform_0(%arg0: i32) -> (i32, i32, i32) {
    %c0_i32 = arith.constant 0 : i32
    %c0_i32_0 = arith.constant 0 : i32
    %c0_i32_1 = arith.constant 0 : i32
    return %arg0, %c0_i32, %c0_i32_0 : i32, i32, i32
  }
  func.func @transform_1(%arg0: i32) -> (i32, i32, i32) {
    %c0_i32 = arith.constant 0 : i32
    %c0_i32_0 = arith.constant 0 : i32
    %c0_i32_1 = arith.constant 0 : i32
    return %arg0, %c0_i32, %c0_i32_0 : i32, i32, i32
  }
  func.func @transform_2(%arg0: i32) -> (i32, i32, i32) {
    %c0_i32 = arith.constant 0 : i32
    %c0_i32_0 = arith.constant 0 : i32
    %c0_i32_1 = arith.constant 0 : i32
    return %arg0, %c0_i32, %c0_i32_0 : i32, i32, i32
  }
  func.func @transform_3(%arg0: i32) -> (i32, i32) {
    %c0_i32 = arith.constant 0 : i32
    %c0_i32_0 = arith.constant 0 : i32
    %c0_i32_1 = arith.constant 0 : i32
    return %c0_i32, %c0_i32_0 : i32, i32
  }
  func.func @transform_4(%arg0: i32) -> (i32, i32) {
    %c0_i32 = arith.constant 0 : i32
    %c0_i32_0 = arith.constant 0 : i32
    %c0_i32_1 = arith.constant 0 : i32
    return %c0_i32, %c0_i32_0 : i32, i32
  }
  func.func @transform_5(%arg0: i32) -> (i32, i32) {
    %c0_i32 = arith.constant 0 : i32
    %c0_i32_0 = arith.constant 0 : i32
    %c0_i32_1 = arith.constant 0 : i32
    return %c0_i32, %c0_i32_0 : i32, i32
  }
  func.func @transform_6(%arg0: i32) -> (i32, i32) {
    %c0_i32 = arith.constant 0 : i32
    %c0_i32_0 = arith.constant 0 : i32
    %c0_i32_1 = arith.constant 0 : i32
    return %c0_i32, %c0_i32_0 : i32, i32
  }
  func.func @transform_7(%arg0: i32) -> (i32, i32) {
    %c0_i32 = arith.constant 0 : i32
    %c0_i32_0 = arith.constant 0 : i32
    %c0_i32_1 = arith.constant 0 : i32
    return %c0_i32, %c0_i32_0 : i32, i32
  }
  func.func @transform_8(%arg0: i32) -> (i32, i32) {
    %c0_i32 = arith.constant 0 : i32
    %c0_i32_0 = arith.constant 0 : i32
    %c0_i32_1 = arith.constant 0 : i32
    return %c0_i32, %c0_i32_0 : i32, i32
  }
  func.func @transform_9(%arg0: i32) -> (i32, i32) {
    %c0_i32 = arith.constant 0 : i32
    %c0_i32_0 = arith.constant 0 : i32
    %c0_i32_1 = arith.constant 0 : i32
    return %c0_i32, %c0_i32_0 : i32, i32
  }
  func.func @transform_10(%arg0: i32) -> (i32, i32) {
    %c0_i32 = arith.constant 0 : i32
    %c0_i32_0 = arith.constant 0 : i32
    %c0_i32_1 = arith.constant 0 : i32
    return %c0_i32, %c0_i32_0 : i32, i32
  }
  func.func @transform_11(%arg0: i32) -> (i32, i32, i32) {
    %c0_i32 = arith.constant 0 : i32
    %c0_i32_0 = arith.constant 0 : i32
    %c0_i32_1 = arith.constant 0 : i32
    return %arg0, %c0_i32, %c0_i32_0 : i32, i32, i32
  }
  func.func @transform_12(%arg0: i32) -> (i32, i32, i32) {
    %c0_i32 = arith.constant 0 : i32
    %c0_i32_0 = arith.constant 0 : i32
    %c0_i32_1 = arith.constant 0 : i32
    return %arg0, %c0_i32, %c0_i32_0 : i32, i32, i32
  }
}

</mosaic_0001>

<llo_original>
// kernel: tpu_custom_call.1
$region0: #{tpu_custom_call.1}
  #allocation0 [shape = 'u32[]', space=smem, size = 0x4, offset = 0x4, fixed_abs, tag = 'smem constant byte address 0x4 - core index']
  #allocation1 [shape = 'u32[144,128]{1,0:T(1,128)}', space=vmem, size = 0x12000, scoped, tag = 'internal scratch']
  %s0 = inlined_call_operand.hbm [shape: f32[2,1,32], index: 0, kind: input, shape index: {}]
  %s1 = inlined_call_operand.hbm [shape: f32[2,8,32], index: 1, kind: input, shape index: {}]
  %s2 = inlined_call_operand.vmem [shape: s32[2,8,1], index: 2, kind: input, shape index: {}]
  %s3 = inlined_call_operand.vmem [shape: f32[32,32], index: 3, kind: input, shape index: {}]
  %s4 = inlined_call_operand.hbm [shape: f32[1,32], index: 4, kind: input, shape index: {}]
  %s5 = inlined_call_operand.vmem [shape: f32[32,32], index: 5, kind: input, shape index: {}]
  %s6 = inlined_call_operand.vmem [shape: f32[1,32], index: 6, kind: input, shape index: {}]
  %s7 = inlined_call_operand.hbm [shape: f32[32,32], index: 7, kind: input, shape index: {}]
  %s8 = inlined_call_operand.vmem [shape: f32[1,32], index: 8, kind: input, shape index: {}]
  %s9 = inlined_call_operand.vmem [shape: f32[32,4], index: 9, kind: input, shape index: {}]
  %s10 = inlined_call_operand.vmem [shape: f32[4,32], index: 10, kind: input, shape index: {}]
  %s11 = inlined_call_operand.hbm [shape: f32[2,1,32], index: 11, kind: output, shape index: {0}]
  %s12 = inlined_call_operand.hbm [shape: f32[2,4,8], index: 12, kind: output, shape index: {1}]
  %13 = xla_tuple %s11, %s12
  %s14 = sld [smem:[#allocation0]]
  $region101: #{tpu_custom_call.1} parent=0
    _
  %s16 = ssub.s32 1, %s14
  %s17 = scalar_select 0, %s16, %s14
  $region1: #{tpu_custom_call.1} parent=0
    #allocation2 [shape = 'u8[1024]{0}', space=vmem, size = 0x400, scoped, tag = 'input window, operand 0']
    #allocation3 [shape = 's32[2]{0}', space=sflag, size = 0x8, scoped, tag = 'scoped memory for tpu_custom_call.1']
    #allocation4 [shape = 's32[2]{0}', space=sflag, size = 0x8, scoped, tag = 'scoped memory for tpu_custom_call.1']
    #allocation5 [shape = 'u8[8192]{0}', space=vmem, size = 0x2000, scoped, tag = 'input window, operand 1']
    #allocation6 [shape = 's32[2]{0}', space=sflag, size = 0x8, scoped, tag = 'scoped memory for tpu_custom_call.1']
    #allocation7 [shape = 'u8[512]{0}', space=vmem, size = 0x400, scoped, tag = 'input window, operand 4, single buffered']
    #allocation8 [shape = 'u8[16384]{0}', space=vmem, size = 0x4000, scoped, tag = 'input window, operand 7, single buffered']
    #allocation9 [shape = 's32[1]{0}', space=sflag, size = 0x4, scoped, tag = 'scoped memory for tpu_custom_call.1']
    #allocation10 [shape = 'u8[1024]{0}', space=vmem, size = 0x400, scoped, tag = 'output window, operand 0']
    #allocation11 [shape = 'u8[4096]{0}', space=vmem, size = 0x1000, scoped, tag = 'output window, operand 1']
    #allocation12 [shape = 's32[2]{0}', space=sflag, size = 0x8, scoped, tag = 'scoped memory for tpu_custom_call.1']
    %18 = vsyncpa [#allocation3], 0
    %s19 = scalar_lea.sflag [#allocation3], 1
    %20 = vsyncpa %s19, 0
    %21 = vsyncpa [#allocation6], 0
    %s22 = scalar_lea.sflag [#allocation6], 1
    %23 = vsyncpa %s22, 0
    %24 = vsyncpa [#allocation9], 0
    %25 = vsyncpa [#allocation4], 0
    %s26 = scalar_lea.sflag [#allocation4], 1
    %27 = vsyncpa %s26, 0
    %28 = vsyncpa [#allocation12], 0
    %s29 = scalar_lea.sflag [#allocation12], 1
    %30 = vsyncpa %s29, 0
    loop: start=0, step=1, limit=4
    $region2: #{tpu_custom_call.1} parent=1 // loop_pre_header
      _
    $region3: #{tpu_custom_call.1} parent=1 // loop_header
      %s32 = sphi 0, %s36
      %p33 = scmp.ge.s32.totalorder %s32, 4
      %s42 = sphi 0, %s44
      %s45 = sphi 0, %s42
      %s46 = sphi 0, %s45
      %s62 = sphi 0, %s46
      %s68 = sphi 0, %s70
      %s71 = sphi 0, %s68
      %s72 = sphi 0, %s71
      %s88 = sphi 0, %s72
      %s94 = sphi 0, %s96
      %s97 = sphi 0, %s94
      %s98 = sphi 0, %s97
      %s114 = sphi 0, %s98
      %s118 = sphi 0, %s118
      %s120 = sphi 0, %s118
      %s121 = sphi 0, %s120
      %s135 = sphi 0, %s121
      %s139 = sphi 0, %s139
      %s141 = sphi 0, %s139
      %s142 = sphi 0, %s141
      %s156 = sphi 0, %s142
      %s160 = sphi 0, %s160
      %s162 = sphi 0, %s160
      %s163 = sphi 0, %s162
      %s177 = sphi 0, %s163
      %s181 = sphi 0, %s181
      %s183 = sphi 0, %s181
      %s184 = sphi 0, %s183
      %s198 = sphi 0, %s184
      %s202 = sphi 0, %s202
      %s204 = sphi 0, %s202
      %s205 = sphi 0, %s204
      %s219 = sphi 0, %s205
      %s223 = sphi 0, %s223
      %s225 = sphi 0, %s223
      %s226 = sphi 0, %s225
      %s240 = sphi 0, %s226
      %s244 = sphi 0, %s244
      %s246 = sphi 0, %s244
      %s247 = sphi 0, %s246
      %s261 = sphi 0, %s247
      %s265 = sphi 0, %s265
      %s267 = sphi 0, %s265
      %s268 = sphi 0, %s267
      %s282 = sphi 0, %s268
      %s288 = sphi 0, %s290
      %s291 = sphi 0, %s288
      %s292 = sphi 0, %s291
      %s308 = sphi 0, %s292
      %s314 = sphi 0, %s316
      %s317 = sphi 0, %s314
      %s318 = sphi 0, %s317
      %s334 = sphi 0, %s318
    $region4: #{tpu_custom_call.1} parent=1 // loop_header_branch
      %35 = sbr.rel (%p33) target = $region8
    $region5: #{tpu_custom_call.1} parent=1 // loop_body
      %s37 = ssub.s32 %s32, 1
      %s38 = ssub.s32 %s32, 2
      %s39 = sadd.s32 %s32, 1
      %s40 = ssub.s32 %s32, %s39
      %p41 = scmp.eq.s32.totalorder %s40, 0
      %s43 = sadd.s32 %s42, 1
      %s44 = scalar_select %p41, %s42, %s43
      %p47 = pneg %p41
      %p48 = scmp.eq.s32.totalorder %s32, 1
      %p49 = por %p47, %p48
      %p50 = scmp.ne.s32.totalorder %s42, %s45
      %p51 = scmp.eq.s32.totalorder %s32, 0
      %p52 = por %p50, %p51
      %p53 = scmp.ne.s32.totalorder %s42, %s45
      %p54 = scmp.eq.s32.totalorder %s37, 1
      %p55 = por %p53, %p54
      %p56 = scmp.ne.s32.totalorder %s45, %s46
      %p57 = scmp.eq.s32.totalorder %s37, 0
      %p58 = por %p56, %p57
      %p59 = scmp.ne.s32.totalorder %s45, %s46
      %p60 = scmp.eq.s32.totalorder %s38, 1
      %p61 = por %p59, %p60
      %p63 = scmp.ne.s32.totalorder %s46, %s62
      %p64 = scmp.eq.s32.totalorder %s38, 0
      %p65 = por %p63, %p64
      %s66 = ssub.s32 %s32, %s39
      %p67 = scmp.eq.s32.totalorder %s66, 0
      %s69 = sadd.s32 %s68, 1
      %s70 = scalar_select %p67, %s68, %s69
      %p73 = pneg %p67
      %p74 = scmp.eq.s32.totalorder %s32, 1
      %p75 = por %p73, %p74
      %p76 = scmp.ne.s32.totalorder %s68, %s71
      %p77 = scmp.eq.s32.totalorder %s32, 0
      %p78 = por %p76, %p77
      %p79 = scmp.ne.s32.totalorder %s68, %s71
      %p80 = scmp.eq.s32.totalorder %s37, 1
      %p81 = por %p79, %p80
      %p82 = scmp.ne.s32.totalorder %s71, %s72
      %p83 = scmp.eq.s32.totalorder %s37, 0
      %p84 = por %p82, %p83
      %p85 = scmp.ne.s32.totalorder %s71, %s72
      %p86 = scmp.eq.s32.totalorder %s38, 1
      %p87 = por %p85, %p86
      %p89 = scmp.ne.s32.totalorder %s72, %s88
      %p90 = scmp.eq.s32.totalorder %s38, 0
      %p91 = por %p89, %p90
      %s92 = ssub.s32 %s32, %s39
      %p93 = scmp.eq.s32.totalorder %s92, 0
      %s95 = sadd.s32 %s94, 1
      %s96 = scalar_select %p93, %s94, %s95
      %p99 = pneg %p93
      %p100 = scmp.eq.s32.totalorder %s32, 1
      %p101 = por %p99, %p100
      %p102 = scmp.ne.s32.totalorder %s94, %s97
      %p103 = scmp.eq.s32.totalorder %s32, 0
      %p104 = por %p102, %p103
      %p105 = scmp.ne.s32.totalorder %s94, %s97
      %p106 = scmp.eq.s32.totalorder %s37, 1
      %p107 = por %p105, %p106
      %p108 = scmp.ne.s32.totalorder %s97, %s98
      %p109 = scmp.eq.s32.totalorder %s37, 0
      %p110 = por %p108, %p109
      %p111 = scmp.ne.s32.totalorder %s97, %s98
      %p112 = scmp.eq.s32.totalorder %s38, 1
      %p113 = por %p111, %p112
      %p115 = scmp.ne.s32.totalorder %s98, %s114
      %p116 = scmp.eq.s32.totalorder %s38, 0
      %p117 = por %p115, %p116
      %s119 = sadd.s32 %s118, 1
      %p122 = scmp.eq.s32.totalorder %s32, 1
      %p123 = scmp.ne.s32.totalorder %s118, %s120
      %p124 = scmp.eq.s32.totalorder %s32, 0
      %p125 = por %p123, %p124
      %p126 = scmp.ne.s32.totalorder %s118, %s120
      %p127 = scmp.eq.s32.totalorder %s37, 1
      %p128 = por %p126, %p127
      %p129 = scmp.ne.s32.totalorder %s120, %s121
      %p130 = scmp.eq.s32.totalorder %s37, 0
      %p131 = por %p129, %p130
      %p132 = scmp.ne.s32.totalorder %s120, %s121
      %p133 = scmp.eq.s32.totalorder %s38, 1
      %p134 = por %p132, %p133
      %p136 = scmp.ne.s32.totalorder %s121, %s135
      %p137 = scmp.eq.s32.totalorder %s38, 0
      %p138 = por %p136, %p137
      %s140 = sadd.s32 %s139, 1
      %p143 = scmp.eq.s32.totalorder %s32, 1
      %p144 = scmp.ne.s32.totalorder %s139, %s141
      %p145 = scmp.eq.s32.totalorder %s32, 0
      %p146 = por %p144, %p145
      %p147 = scmp.ne.s32.totalorder %s139, %s141
      %p148 = scmp.eq.s32.totalorder %s37, 1
      %p149 = por %p147, %p148
      %p150 = scmp.ne.s32.totalorder %s141, %s142
      %p151 = scmp.eq.s32.totalorder %s37, 0
      %p152 = por %p150, %p151
      %p153 = scmp.ne.s32.totalorder %s141, %s142
      %p154 = scmp.eq.s32.totalorder %s38, 1
      %p155 = por %p153, %p154
      %p157 = scmp.ne.s32.totalorder %s142, %s156
      %p158 = scmp.eq.s32.totalorder %s38, 0
      %p159 = por %p157, %p158
      %s161 = sadd.s32 %s160, 1
      %p164 = scmp.eq.s32.totalorder %s32, 1
      %p165 = scmp.ne.s32.totalorder %s160, %s162
      %p166 = scmp.eq.s32.totalorder %s32, 0
      %p167 = por %p165, %p166
      %p168 = scmp.ne.s32.totalorder %s160, %s162
      %p169 = scmp.eq.s32.totalorder %s37, 1
      %p170 = por %p168, %p169
      %p171 = scmp.ne.s32.totalorder %s162, %s163
      %p172 = scmp.eq.s32.totalorder %s37, 0
      %p173 = por %p171, %p172
      %p174 = scmp.ne.s32.totalorder %s162, %s163
      %p175 = scmp.eq.s32.totalorder %s38, 1
      %p176 = por %p174, %p175
      %p178 = scmp.ne.s32.totalorder %s163, %s177
      %p179 = scmp.eq.s32.totalorder %s38, 0
      %p180 = por %p178, %p179
      %s182 = sadd.s32 %s181, 1
      %p185 = scmp.eq.s32.totalorder %s32, 1
      %p186 = scmp.ne.s32.totalorder %s181, %s183
      %p187 = scmp.eq.s32.totalorder %s32, 0
      %p188 = por %p186, %p187
      %p189 = scmp.ne.s32.totalorder %s181, %s183
      %p190 = scmp.eq.s32.totalorder %s37, 1
      %p191 = por %p189, %p190
      %p192 = scmp.ne.s32.totalorder %s183, %s184
      %p193 = scmp.eq.s32.totalorder %s37, 0
      %p194 = por %p192, %p193
      %p195 = scmp.ne.s32.totalorder %s183, %s184
      %p196 = scmp.eq.s32.totalorder %s38, 1
      %p197 = por %p195, %p196
      %p199 = scmp.ne.s32.totalorder %s184, %s198
      %p200 = scmp.eq.s32.totalorder %s38, 0
      %p201 = por %p199, %p200
      %s203 = sadd.s32 %s202, 1
      %p206 = scmp.eq.s32.totalorder %s32, 1
      %p207 = scmp.ne.s32.totalorder %s202, %s204
      %p208 = scmp.eq.s32.totalorder %s32, 0
      %p209 = por %p207, %p208
      %p210 = scmp.ne.s32.totalorder %s202, %s204
      %p211 = scmp.eq.s32.totalorder %s37, 1
      %p212 = por %p210, %p211
      %p213 = scmp.ne.s32.totalorder %s204, %s205
      %p214 = scmp.eq.s32.totalorder %s37, 0
      %p215 = por %p213, %p214
      %p216 = scmp.ne.s32.totalorder %s204, %s205
      %p217 = scmp.eq.s32.totalorder %s38, 1
      %p218 = por %p216, %p217
      %p220 = scmp.ne.s32.totalorder %s205, %s219
      %p221 = scmp.eq.s32.totalorder %s38, 0
      %p222 = por %p220, %p221
      %s224 = sadd.s32 %s223, 1
      %p227 = scmp.eq.s32.totalorder %s32, 1
      %p228 = scmp.ne.s32.totalorder %s223, %s225
      %p229 = scmp.eq.s32.totalorder %s32, 0
      %p230 = por %p228, %p229
      %p231 = scmp.ne.s32.totalorder %s223, %s225
      %p232 = scmp.eq.s32.totalorder %s37, 1
      %p233 = por %p231, %p232
      %p234 = scmp.ne.s32.totalorder %s225, %s226
      %p235 = scmp.eq.s32.totalorder %s37, 0
      %p236 = por %p234, %p235
      %p237 = scmp.ne.s32.totalorder %s225, %s226
      %p238 = scmp.eq.s32.totalorder %s38, 1
      %p239 = por %p237, %p238
      %p241 = scmp.ne.s32.totalorder %s226, %s240
      %p242 = scmp.eq.s32.totalorder %s38, 0
      %p243 = por %p241, %p242
      %s245 = sadd.s32 %s244, 1
      %p248 = scmp.eq.s32.totalorder %s32, 1
      %p249 = scmp.ne.s32.totalorder %s244, %s246
      %p250 = scmp.eq.s32.totalorder %s32, 0
      %p251 = por %p249, %p250
      %p252 = scmp.ne.s32.totalorder %s244, %s246
      %p253 = scmp.eq.s32.totalorder %s37, 1
      %p254 = por %p252, %p253
      %p255 = scmp.ne.s32.totalorder %s246, %s247
      %p256 = scmp.eq.s32.totalorder %s37, 0
      %p257 = por %p255, %p256
      %p258 = scmp.ne.s32.totalorder %s246, %s247
      %p259 = scmp.eq.s32.totalorder %s38, 1
      %p260 = por %p258, %p259
      %p262 = scmp.ne.s32.totalorder %s247, %s261
      %p263 = scmp.eq.s32.totalorder %s38, 0
      %p264 = por %p262, %p263
      %s266 = sadd.s32 %s265, 1
      %p269 = scmp.eq.s32.totalorder %s32, 1
      %p270 = scmp.ne.s32.totalorder %s265, %s267
      %p271 = scmp.eq.s32.totalorder %s32, 0
      %p272 = por %p270, %p271
      %p273 = scmp.ne.s32.totalorder %s265, %s267
      %p274 = scmp.eq.s32.totalorder %s37, 1
      %p275 = por %p273, %p274
      %p276 = scmp.ne.s32.totalorder %s267, %s268
      %p277 = scmp.eq.s32.totalorder %s37, 0
      %p278 = por %p276, %p277
      %p279 = scmp.ne.s32.totalorder %s267, %s268
      %p280 = scmp.eq.s32.totalorder %s38, 1
      %p281 = por %p279, %p280
      %p283 = scmp.ne.s32.totalorder %s268, %s282
      %p284 = scmp.eq.s32.totalorder %s38, 0
      %p285 = por %p283, %p284
      %s286 = ssub.s32 %s32, %s39
      %p287 = scmp.eq.s32.totalorder %s286, 0
      %s289 = sadd.s32 %s288, 1
      %s290 = scalar_select %p287, %s288, %s289
      %p293 = pneg %p287
      %p294 = scmp.eq.s32.totalorder %s32, 1
      %p295 = por %p293, %p294
      %p296 = scmp.ne.s32.totalorder %s288, %s291
      %p297 = scmp.eq.s32.totalorder %s32, 0
      %p298 = por %p296, %p297
      %p299 = scmp.ne.s32.totalorder %s288, %s291
      %p300 = scmp.eq.s32.totalorder %s37, 1
      %p301 = por %p299, %p300
      %p302 = scmp.ne.s32.totalorder %s291, %s292
      %p303 = scmp.eq.s32.totalorder %s37, 0
      %p304 = por %p302, %p303
      %p305 = scmp.ne.s32.totalorder %s291, %s292
      %p306 = scmp.eq.s32.totalorder %s38, 1
      %p307 = por %p305, %p306
      %p309 = scmp.ne.s32.totalorder %s292, %s308
      %p310 = scmp.eq.s32.totalorder %s38, 0
      %p311 = por %p309, %p310
      %s312 = ssub.s32 %s32, %s39
      %p313 = scmp.eq.s32.totalorder %s312, 0
      %s315 = sadd.s32 %s314, 1
      %s316 = scalar_select %p313, %s314, %s315
      %p319 = pneg %p313
      %p320 = scmp.eq.s32.totalorder %s32, 1
      %p321 = por %p319, %p320
      %p322 = scmp.ne.s32.totalorder %s314, %s317
      %p323 = scmp.eq.s32.totalorder %s32, 0
      %p324 = por %p322, %p323
      %p325 = scmp.ne.s32.totalorder %s314, %s317
      %p326 = scmp.eq.s32.totalorder %s37, 1
      %p327 = por %p325, %p326
      %p328 = scmp.ne.s32.totalorder %s317, %s318
      %p329 = scmp.eq.s32.totalorder %s37, 0
      %p330 = por %p328, %p329
      %p331 = scmp.ne.s32.totalorder %s317, %s318
      %p332 = scmp.eq.s32.totalorder %s38, 1
      %p333 = por %p331, %p332
      %p335 = scmp.ne.s32.totalorder %s318, %s334
      %p336 = scmp.eq.s32.totalorder %s38, 0
      %p337 = por %p335, %p336
      %p338 = scmp.le.s32.totalorder 1, %s32
      %p339 = scmp.lt.s32.totalorder %s32, 3
      %p340 = pnand %p338, %p339
      %p341 = pneg %p340
      // Predicated region
      $region9: #{tpu_custom_call.1} parent=5 // pred_check
        _
      $region10: #{tpu_custom_call.1} parent=5 // pred_check_branch
        %343 = sbr.rel (%p340) target = $region12
      $region11: #{tpu_custom_call.1} parent=5 // pred_region
        %s344 = ssub.s32 %s32, 1
        // Predicated region
        $region13: #{tpu_custom_call.1} parent=11 // pred_check
          %p345 = pneg %p131
        $region14: #{tpu_custom_call.1} parent=11 // pred_check_branch
          %347 = sbr.rel (%p345) target = $region16
        $region15: #{tpu_custom_call.1} parent=11 // pred_region
          _
        $region16: #{tpu_custom_call.1} parent=11 // pred_fallthru
          _
        // Predicated region
        $region17: #{tpu_custom_call.1} parent=11 // pred_check
          %p348 = pneg %p152
        $region18: #{tpu_custom_call.1} parent=11 // pred_check_branch
          %350 = sbr.rel (%p348) target = $region20
        $region19: #{tpu_custom_call.1} parent=11 // pred_region
          %s352 = ssub.s32 16, 16
          %353 = vsyncadd [#allocation6], %s352
          %s355 = sshll.u32 [#allocation7], 4
          %s356 = int_to_ptr.vmem [resolvable:$true] %s355
          %358 = dma.hbm_to_vmem [thread:$0]  %s4, 16, %s356, [#allocation6]
        $region20: #{tpu_custom_call.1} parent=11 // pred_fallthru
          _
        // Predicated region
        $region21: #{tpu_custom_call.1} parent=11 // pred_check
          %p359 = pneg %p173
        $region22: #{tpu_custom_call.1} parent=11 // pred_check_branch
          %361 = sbr.rel (%p359) target = $region24
        $region23: #{tpu_custom_call.1} parent=11 // pred_region
          _
        $region24: #{tpu_custom_call.1} parent=11 // pred_fallthru
          _
        // Predicated region
        $region25: #{tpu_custom_call.1} parent=11 // pred_check
          %p362 = pneg %p194
        $region26: #{tpu_custom_call.1} parent=11 // pred_check_branch
          %364 = sbr.rel (%p362) target = $region28
        $region27: #{tpu_custom_call.1} parent=11 // pred_region
          _
        $region28: #{tpu_custom_call.1} parent=11 // pred_fallthru
          _
        // Predicated region
        $region29: #{tpu_custom_call.1} parent=11 // pred_check
          %p365 = pneg %p215
        $region30: #{tpu_custom_call.1} parent=11 // pred_check_branch
          %367 = sbr.rel (%p365) target = $region32
        $region31: #{tpu_custom_call.1} parent=11 // pred_region
          %s369 = ssub.s32 512, 512
          %370 = vsyncadd [#allocation9], %s369
          %s371 = sshll.u32 [#allocation8], 4
          %s372 = int_to_ptr.vmem [resolvable:$true] %s371
          %377 = dma.hbm_to_vmem [thread:$0]  %s7, 512, %s372, [#allocation9], 128, 128, 8
        $region32: #{tpu_custom_call.1} parent=11 // pred_fallthru
          _
        // Predicated region
        $region33: #{tpu_custom_call.1} parent=11 // pred_check
          %p378 = pneg %p236
        $region34: #{tpu_custom_call.1} parent=11 // pred_check_branch
          %380 = sbr.rel (%p378) target = $region36
        $region35: #{tpu_custom_call.1} parent=11 // pred_region
          _
        $region36: #{tpu_custom_call.1} parent=11 // pred_fallthru
          _
        // Predicated region
        $region37: #{tpu_custom_call.1} parent=11 // pred_check
          %p381 = pneg %p257
        $region38: #{tpu_custom_call.1} parent=11 // pred_check_branch
          %383 = sbr.rel (%p381) target = $region40
        $region39: #{tpu_custom_call.1} parent=11 // pred_region
          _
        $region40: #{tpu_custom_call.1} parent=11 // pred_fallthru
          _
        // Predicated region
        $region41: #{tpu_custom_call.1} parent=11 // pred_check
          %p384 = pneg %p278
        $region42: #{tpu_custom_call.1} parent=11 // pred_check_branch
          %386 = sbr.rel (%p384) target = $region44
        $region43: #{tpu_custom_call.1} parent=11 // pred_region
          _
        $region44: #{tpu_custom_call.1} parent=11 // pred_fallthru
          _
      $region12: #{tpu_custom_call.1} parent=5 // pred_fallthru
        _
      %p387 = scmp.lt.s32.totalorder %s32, 2
      // Predicated region
      $region45: #{tpu_custom_call.1} parent=5 // pred_check
        %p388 = pneg %p387
      $region46: #{tpu_custom_call.1} parent=5 // pred_check_branch
        %390 = sbr.rel (%p388) target = $region48
      $region47: #{tpu_custom_call.1} parent=5 // pred_region
        // Predicated region
        $region49: #{tpu_custom_call.1} parent=47 // pred_check
          %p391 = pneg %p52
        $region50: #{tpu_custom_call.1} parent=47 // pred_check_branch
          %393 = sbr.rel (%p391) target = $region52
        $region51: #{tpu_custom_call.1} parent=47 // pred_region
          %s394 = sand.u32 %s42, 1
          %s395 = scalar_lea.sflag [#allocation3], %s394
          %s396 = sand.u32 %s42, 1
          %s397 = scalar_lea.vmem [#allocation2], %s396
          %s399 = ssub.s32 16, 16
          %400 = vsyncadd %s395, %s399
          %s401 = smul.addr %s32, 16
          %s402 = scalar_lea.hbm %s0, %s401
          %s404 = sshll.u32 %s397, 4
          %s405 = int_to_ptr.vmem [resolvable:$true] %s404
          %407 = dma.hbm_to_vmem [thread:$0]  %s402, 16, %s405, %s395
        $region52: #{tpu_custom_call.1} parent=47 // pred_fallthru
          _
        // Predicated region
        $region53: #{tpu_custom_call.1} parent=47 // pred_check
          %p408 = pneg %p78
        $region54: #{tpu_custom_call.1} parent=47 // pred_check_branch
          %410 = sbr.rel (%p408) target = $region56
        $region55: #{tpu_custom_call.1} parent=47 // pred_region
          %s411 = sand.u32 %s32, 1
          %s412 = scalar_lea.sflag [#allocation6], %s411
          %s413 = sand.u32 %s68, 1
          %s414 = smul.addr %s413, 8
          %s415 = scalar_lea.vmem [#allocation5], %s414
          %s417 = ssub.s32 128, 128
          %418 = vsyncadd %s412, %s417
          %s419 = smul.addr %s32, 128
          %s420 = scalar_lea.hbm %s1, %s419
          %s422 = sshll.u32 %s415, 4
          %s423 = int_to_ptr.vmem [resolvable:$true] %s422
          %425 = dma.hbm_to_vmem [thread:$0]  %s420, 128, %s423, %s412
        $region56: #{tpu_custom_call.1} parent=47 // pred_fallthru
          _
        // Predicated region
        $region57: #{tpu_custom_call.1} parent=47 // pred_check
          %p426 = pneg %p104
        $region58: #{tpu_custom_call.1} parent=47 // pred_check_branch
          %428 = sbr.rel (%p426) target = $region60
        $region59: #{tpu_custom_call.1} parent=47 // pred_region
          %p429 = scmp.lt.s32.totalorder %s32, 1
          %s430 = scalar_select %p429, %s32, 1
          %s431 = smul.addr %s430, 8
          %s432 = scalar_lea.vmem %s2, %s431
        $region60: #{tpu_custom_call.1} parent=47 // pred_fallthru
          _
      $region48: #{tpu_custom_call.1} parent=5 // pred_fallthru
        _
      %p433 = scmp.le.s32.totalorder 1, %s32
      %p434 = scmp.lt.s32.totalorder %s32, 3
      %p435 = pnand %p433, %p434
      %p436 = pneg %p435
      // Predicated region
      $region61: #{tpu_custom_call.1} parent=5 // pred_check
        _
      $region62: #{tpu_custom_call.1} parent=5 // pred_check_branch
        %438 = sbr.rel (%p435) target = $region64
      $region63: #{tpu_custom_call.1} parent=5 // pred_region
        %s439 = ssub.s32 %s32, 1
        %s440 = sand.u32 %s45, 1
        %s441 = scalar_lea.sflag [#allocation3], %s440
        %s442 = sand.u32 %s45, 1
        %s443 = scalar_lea.vmem [#allocation2], %s442
        // Predicated region
        $region65: #{tpu_custom_call.1} parent=63 // pred_check
          %p444 = pneg %p58
        $region66: #{tpu_custom_call.1} parent=63 // pred_check_branch
          %446 = sbr.rel (%p444) target = $region68
        $region67: #{tpu_custom_call.1} parent=63 // pred_region
          %447 = dma.done %s441, 16
        $region68: #{tpu_custom_call.1} parent=63 // pred_fallthru
          _
        %s448 = sand.u32 %s37, 1
        %s449 = scalar_lea.sflag [#allocation6], %s448
        %s450 = sand.u32 %s71, 1
        %s451 = smul.addr %s450, 8
        %s452 = scalar_lea.vmem [#allocation5], %s451
        // Predicated region
        $region69: #{tpu_custom_call.1} parent=63 // pred_check
          %p453 = pneg %p84
        $region70: #{tpu_custom_call.1} parent=63 // pred_check_branch
          %455 = sbr.rel (%p453) target = $region72
        $region71: #{tpu_custom_call.1} parent=63 // pred_region
          %456 = dma.done %s449, 128
        $region72: #{tpu_custom_call.1} parent=63 // pred_fallthru
          _
        // Predicated region
        $region73: #{tpu_custom_call.1} parent=63 // pred_check
          %p457 = pneg %p152
        $region74: #{tpu_custom_call.1} parent=63 // pred_check_branch
          %459 = sbr.rel (%p457) target = $region76
        $region75: #{tpu_custom_call.1} parent=63 // pred_region
          %460 = dma.done [#allocation6], 16
        $region76: #{tpu_custom_call.1} parent=63 // pred_fallthru
          _
        // Predicated region
        $region77: #{tpu_custom_call.1} parent=63 // pred_check
          %p461 = pneg %p215
        $region78: #{tpu_custom_call.1} parent=63 // pred_check_branch
          %463 = sbr.rel (%p461) target = $region80
        $region79: #{tpu_custom_call.1} parent=63 // pred_region
          %464 = dma.done [#allocation9], 512
        $region80: #{tpu_custom_call.1} parent=63 // pred_fallthru
          _
        %s465 = sand.u32 %s45, 1
        %s466 = scalar_lea.sflag [#allocation3], %s465
        %s467 = sand.u32 %s45, 1
        %s468 = scalar_lea.vmem [#allocation2], %s467
        %p469 = pneg %p58
        %p470 = pneg %p55
        %s471 = sand.u32 %s37, 1
        %s472 = scalar_lea.sflag [#allocation6], %s471
        %s473 = sand.u32 %s71, 1
        %s474 = smul.addr %s473, 8
        %s475 = scalar_lea.vmem [#allocation5], %s474
        %p476 = pneg %p84
        %p477 = pneg %p81
        %p478 = scmp.lt.s32.totalorder %s37, 1
        %s479 = scalar_select %p478, %s37, 1
        %s480 = smul.addr %s479, 8
        %s481 = scalar_lea.vmem %s2, %s480
        %p482 = pneg %p110
        %p483 = pneg %p107
        %p484 = pneg %p131
        %p485 = pneg %p128
        %p486 = pneg %p152
        %p487 = pneg %p149
        %p488 = pneg %p173
        %p489 = pneg %p170
        %p490 = pneg %p194
        %p491 = pneg %p191
        %p492 = pneg %p215
        %p493 = pneg %p212
        %p494 = pneg %p236
        %p495 = pneg %p233
        %p496 = pneg %p257
        %p497 = pneg %p254
        %p498 = pneg %p278
        %p499 = pneg %p275
        %p500 = pneg %p304
        %p501 = pneg %p301
        %s502 = sand.u32 %s291, 1
        %s503 = scalar_lea.sflag [#allocation4], %s502
        %s504 = sand.u32 %s291, 1
        %s505 = scalar_lea.vmem [#allocation10], %s504
        %p506 = pneg %p330
        %p507 = pneg %p327
        %s508 = sand.u32 %s317, 1
        %s509 = scalar_lea.sflag [#allocation12], %s508
        %s510 = sand.u32 %s317, 1
        %s511 = smul.addr %s510, 4
        %s512 = scalar_lea.vmem [#allocation11], %s511
        %p513 = scmp.lt.s32.totalorder %s37, 1
        %s514 = scalar_select %p513, %s37, 1
        %s515 = smul.addr %s514, 8
        %s516 = scalar_lea.vmem %s2, %s515
        %v517 = vld [vmem:[%s443] sm:$0x1]
        %v518 = vld [vmem:[%s452] sm:$0xff]
        %v519 = vld [vmem:[%s3] sm:$0xff]
        %v520 = vld [vmem:[%s3 + $0x8] sm:$0xff]
        %v521 = vld [vmem:[%s3 + $0x10] sm:$0xff]
        %v522 = vld [vmem:[%s3 + $0x18] sm:$0xff]
        %v523 = vld [vmem:[#allocation7] sm:$0x1]
        %vm524 = vcmask 261120
        %v526 = vsel %vm524, %v517, 0
        %528 = vmatprep.subr.mxu0 0.0
        %529 = vmatpush1.msra.mxu0 %v519
        %530 = vmatprep.subr.mxu0 0.0
        %531 = vmatpush1.msra.mxu0 %v520
        %532 = vmatprep.subr.mxu0 0.0
        %533 = vmatpush1.msra.mxu0 %v521
        %534 = vmatprep.subr.mxu0 0.0
        %535 = vmatpush1.msra.mxu0 %v522
        %536 = vmatprep.subr.mxu0 0.0
        %537 = vmatpush1.msra.mxu0 0.0
        %538 = vmatprep.subr.mxu0 0.0
        %539 = vmatpush1.msra.mxu0 0.0
        %540 = vmatprep.subr.mxu0 0.0
        %541 = vmatpush1.msra.mxu0 0.0
        %542 = vmatprep.subr.mxu0 0.0
        %543 = vmatpush1.msra.mxu0 0.0
        %544 = vmatprep.subr.mxu0 0.0
        %545 = vmatpush1.msra.mxu0 0.0
        %546 = vmatprep.subr.mxu0 0.0
        %547 = vmatpush1.msra.mxu0 0.0
        %548 = vmatprep.subr.mxu0 0.0
        %549 = vmatpush1.msra.mxu0 0.0
        %550 = vmatprep.subr.mxu0 0.0
        %551 = vmatpush1.msra.mxu0 0.0
        %552 = vmatprep.subr.mxu0 0.0
        %553 = vmatpush1.msra.mxu0 0.0
        %554 = vmatprep.subr.mxu0 0.0
        %555 = vmatpush1.msra.mxu0 0.0
        %556 = vmatprep.subr.mxu0 0.0
        %557 = vmatpush1.msra.mxu0 0.0
        %558 = vmatprep.subr.mxu0 0.0
        %559 = vmatpush1.msra.mxu0 0.0
        %560 = vmatprep.subr.mxu0 0.0
        %561 = vmatpush1.msra.mxu0 0.0
        %562 = vmatprep.subr.mxu0 0.0
        %563 = vmatpush1.msra.mxu0 0.0
        %564 = vmatprep.subr.mxu0 0.0
        %565 = vmatpush1.msra.mxu0 0.0
        %566 = vmatprep.subr.mxu0 0.0
        %567 = vmatpush1.msra.mxu0 0.0
        %568 = vmatprep.subr.mxu0 0.0
        %569 = vmatpush1.msra.mxu0 0.0
        %570 = vmatprep.subr.mxu0 0.0
        %571 = vmatpush1.msra.mxu0 0.0
        %572 = vmatprep.subr.mxu0 0.0
        %573 = vmatpush1.msra.mxu0 0.0
        %574 = vmatprep.subr.mxu0 0.0
        %575 = vmatpush1.msra.mxu0 0.0
        %576 = vmatprep.subr.mxu0 0.0
        %577 = vmatpush1.msra.mxu0 0.0
        %578 = vmatprep.subr.mxu0 0.0
        %579 = vmatpush1.msra.mxu0 0.0
        %580 = vmatprep.subr.mxu0 0.0
        %581 = vmatpush1.msra.mxu0 0.0
        %582 = vmatprep.subr.mxu0 0.0
        %583 = vmatpush1.msra.mxu0 0.0
        %584 = vmatprep.subr.mxu0 0.0
        %585 = vmatpush1.msra.mxu0 0.0
        %586 = vmatprep.subr.mxu0 0.0
        %587 = vmatpush1.msra.mxu0 0.0
        %588 = vmatprep.subr.mxu0 0.0
        %589 = vmatpush1.msra.mxu0 0.0
        %590 = vmatprep.subr.mxu0 0.0
        %591 = vmatpush1.msra.mxu0 0.0
        %592 = vmatprep.mubr.f32.mxu0 0.0
        %593 = vmatmul.mubr.f32.gmra.mrb[0].mxu0 %v526
        %v594 = vpop.f32.mrb[0].mxu0
        %v595 = vadd.f32 %v523, %v594
        %v596 = vpop.f32.mrb[0].mxu0
        %597 = vdwg.mxu0
        %v598 = vmul.f32 %v595, 0.35355338
        %v599 = vld [vmem:[%s5] sm:$0xff]
        %v600 = vld [vmem:[%s5 + $0x8] sm:$0xff]
        %v601 = vld [vmem:[%s5 + $0x10] sm:$0xff]
        %v602 = vld [vmem:[%s5 + $0x18] sm:$0xff]
        %v603 = vld [vmem:[%s6] sm:$0x1]
        %v605 = vlaneseq
        %v606 = vshrl.u32 %v605, 7
        %v607 = vsub.s32 0, %v606
        %v608 = vrot.slane %v603, %v607
        %v611 = vsel %vm524, %v518, 0
        %613 = vmatprep.subr.mxu0 0.0
        %614 = vmatpush1.msra.mxu0 %v599
        %615 = vmatprep.subr.mxu0 0.0
        %616 = vmatpush1.msra.mxu0 %v600
        %617 = vmatprep.subr.mxu0 0.0
        %618 = vmatpush1.msra.mxu0 %v601
        %619 = vmatprep.subr.mxu0 0.0
        %620 = vmatpush1.msra.mxu0 %v602
        %621 = vmatprep.subr.mxu0 0.0
        %622 = vmatpush1.msra.mxu0 0.0
        %623 = vmatprep.subr.mxu0 0.0
        %624 = vmatpush1.msra.mxu0 0.0
        %625 = vmatprep.subr.mxu0 0.0
        %626 = vmatpush1.msra.mxu0 0.0
        %627 = vmatprep.subr.mxu0 0.0
        %628 = vmatpush1.msra.mxu0 0.0
        %629 = vmatprep.subr.mxu0 0.0
        %630 = vmatpush1.msra.mxu0 0.0
        %631 = vmatprep.subr.mxu0 0.0
        %632 = vmatpush1.msra.mxu0 0.0
        %633 = vmatprep.subr.mxu0 0.0
        %634 = vmatpush1.msra.mxu0 0.0
        %635 = vmatprep.subr.mxu0 0.0
        %636 = vmatpush1.msra.mxu0 0.0
        %637 = vmatprep.subr.mxu0 0.0
        %638 = vmatpush1.msra.mxu0 0.0
        %639 = vmatprep.subr.mxu0 0.0
        %640 = vmatpush1.msra.mxu0 0.0
        %641 = vmatprep.subr.mxu0 0.0
        %642 = vmatpush1.msra.mxu0 0.0
        %643 = vmatprep.subr.mxu0 0.0
        %644 = vmatpush1.msra.mxu0 0.0
        %645 = vmatprep.subr.mxu0 0.0
        %646 = vmatpush1.msra.mxu0 0.0
        %647 = vmatprep.subr.mxu0 0.0
        %648 = vmatpush1.msra.mxu0 0.0
        %649 = vmatprep.subr.mxu0 0.0
        %650 = vmatpush1.msra.mxu0 0.0
        %651 = vmatprep.subr.mxu0 0.0
        %652 = vmatpush1.msra.mxu0 0.0
        %653 = vmatprep.subr.mxu0 0.0
        %654 = vmatpush1.msra.mxu0 0.0
        %655 = vmatprep.subr.mxu0 0.0
        %656 = vmatpush1.msra.mxu0 0.0
        %657 = vmatprep.subr.mxu0 0.0
        %658 = vmatpush1.msra.mxu0 0.0
        %659 = vmatprep.subr.mxu0 0.0
        %660 = vmatpush1.msra.mxu0 0.0
        %661 = vmatprep.subr.mxu0 0.0
        %662 = vmatpush1.msra.mxu0 0.0
        %663 = vmatprep.subr.mxu0 0.0
        %664 = vmatpush1.msra.mxu0 0.0
        %665 = vmatprep.subr.mxu0 0.0
        %666 = vmatpush1.msra.mxu0 0.0
        %667 = vmatprep.subr.mxu0 0.0
        %668 = vmatpush1.msra.mxu0 0.0
        %669 = vmatprep.subr.mxu0 0.0
        %670 = vmatpush1.msra.mxu0 0.0
        %671 = vmatprep.subr.mxu0 0.0
        %672 = vmatpush1.msra.mxu0 0.0
        %673 = vmatprep.subr.mxu0 0.0
        %674 = vmatpush1.msra.mxu0 0.0
        %675 = vmatprep.subr.mxu0 0.0
        %676 = vmatpush1.msra.mxu0 0.0
        %677 = vmatprep.mubr.f32.mxu0 0.0
        %678 = vmatmul.mubr.f32.gmra.mrb[0].mxu0 %v611
        %v679 = vpop.f32.mrb[0].mxu0
        %v680 = vadd.f32 %v608, %v679
        %v681 = vpop.f32.mrb[0].mxu0
        %682 = vdwg.mxu0
        %v683 = vld [vmem:[#allocation8] sm:$0xff]
        %v684 = vld [vmem:[#allocation8 + $0x8] sm:$0xff]
        %v685 = vld [vmem:[#allocation8 + $0x10] sm:$0xff]
        %v686 = vld [vmem:[#allocation8 + $0x18] sm:$0xff]
        %v687 = vld [vmem:[%s8] sm:$0x1]
        %v689 = vlaneseq
        %v690 = vshrl.u32 %v689, 7
        %v691 = vsub.s32 0, %v690
        %v692 = vrot.slane %v687, %v691
        %694 = vmatprep.subr.mxu0 0.0
        %695 = vmatpush1.msra.mxu0 %v683
        %696 = vmatprep.subr.mxu0 0.0
        %697 = vmatpush1.msra.mxu0 %v684
        %698 = vmatprep.subr.mxu0 0.0
        %699 = vmatpush1.msra.mxu0 %v685
        %700 = vmatprep.subr.mxu0 0.0
        %701 = vmatpush1.msra.mxu0 %v686
        %702 = vmatprep.subr.mxu0 0.0
        %703 = vmatpush1.msra.mxu0 0.0
        %704 = vmatprep.subr.mxu0 0.0
        %705 = vmatpush1.msra.mxu0 0.0
        %706 = vmatprep.subr.mxu0 0.0
        %707 = vmatpush1.msra.mxu0 0.0
        %708 = vmatprep.subr.mxu0 0.0
        %709 = vmatpush1.msra.mxu0 0.0
        %710 = vmatprep.subr.mxu0 0.0
        %711 = vmatpush1.msra.mxu0 0.0
        %712 = vmatprep.subr.mxu0 0.0
        %713 = vmatpush1.msra.mxu0 0.0
        %714 = vmatprep.subr.mxu0 0.0
        %715 = vmatpush1.msra.mxu0 0.0
        %716 = vmatprep.subr.mxu0 0.0
        %717 = vmatpush1.msra.mxu0 0.0
        %718 = vmatprep.subr.mxu0 0.0
        %719 = vmatpush1.msra.mxu0 0.0
        %720 = vmatprep.subr.mxu0 0.0
        %721 = vmatpush1.msra.mxu0 0.0
        %722 = vmatprep.subr.mxu0 0.0
        %723 = vmatpush1.msra.mxu0 0.0
        %724 = vmatprep.subr.mxu0 0.0
        %725 = vmatpush1.msra.mxu0 0.0
        %726 = vmatprep.subr.mxu0 0.0
        %727 = vmatpush1.msra.mxu0 0.0
        %728 = vmatprep.subr.mxu0 0.0
        %729 = vmatpush1.msra.mxu0 0.0
        %730 = vmatprep.subr.mxu0 0.0
        %731 = vmatpush1.msra.mxu0 0.0
        %732 = vmatprep.subr.mxu0 0.0
        %733 = vmatpush1.msra.mxu0 0.0
        %734 = vmatprep.subr.mxu0 0.0
        %735 = vmatpush1.msra.mxu0 0.0
        %736 = vmatprep.subr.mxu0 0.0
        %737 = vmatpush1.msra.mxu0 0.0
        %738 = vmatprep.subr.mxu0 0.0
        %739 = vmatpush1.msra.mxu0 0.0
        %740 = vmatprep.subr.mxu0 0.0
        %741 = vmatpush1.msra.mxu0 0.0
        %742 = vmatprep.subr.mxu0 0.0
        %743 = vmatpush1.msra.mxu0 0.0
        %744 = vmatprep.subr.mxu0 0.0
        %745 = vmatpush1.msra.mxu0 0.0
        %746 = vmatprep.subr.mxu0 0.0
        %747 = vmatpush1.msra.mxu0 0.0
        %748 = vmatprep.subr.mxu0 0.0
        %749 = vmatpush1.msra.mxu0 0.0
        %750 = vmatprep.subr.mxu0 0.0
        %751 = vmatpush1.msra.mxu0 0.0
        %752 = vmatprep.subr.mxu0 0.0
        %753 = vmatpush1.msra.mxu0 0.0
        %754 = vmatprep.subr.mxu0 0.0
        %755 = vmatpush1.msra.mxu0 0.0
        %756 = vmatprep.subr.mxu0 0.0
        %757 = vmatpush1.msra.mxu0 0.0
        %758 = vmatprep.mubr.f32.mxu0 0.0
        %759 = vmatmul.mubr.f32.gmra.mrb[0].mxu0 %v611
        %v760 = vpop.f32.mrb[0].mxu0
        %v761 = vadd.f32 %v692, %v760
        %v762 = vpop.f32.mrb[0].mxu0
        %763 = vdwg.mxu0
        %v764 = vlaneseq
        %v765 = vshrl.u32 %v764, 7
        %v766 = vsub.s32 0, %v765
        %v767 = vrot.slane %v598, %v766
        %v768 = vmul.f32 %v680, %v767
        %v769 = vld [vmem:[%s9] sm:$0xff]
        %v770 = vld [vmem:[%s9 + $0x8] sm:$0xff]
        %v771 = vld [vmem:[%s9 + $0x10] sm:$0xff]
        %v772 = vld [vmem:[%s9 + $0x18] sm:$0xff]
        %v774 = vsel %vm524, %v768, 0
        %776 = vmatprep.subr.mxu0 0.0
        %777 = vmatpush1.msra.mxu0 %v769
        %778 = vmatprep.subr.mxu0 0.0
        %779 = vmatpush1.msra.mxu0 %v770
        %780 = vmatprep.subr.mxu0 0.0
        %781 = vmatpush1.msra.mxu0 %v771
        %782 = vmatprep.subr.mxu0 0.0
        %783 = vmatpush1.msra.mxu0 %v772
        %784 = vmatprep.subr.mxu0 0.0
        %785 = vmatpush1.msra.mxu0 0.0
        %786 = vmatprep.subr.mxu0 0.0
        %787 = vmatpush1.msra.mxu0 0.0
        %788 = vmatprep.subr.mxu0 0.0
        %789 = vmatpush1.msra.mxu0 0.0
        %790 = vmatprep.subr.mxu0 0.0
        %791 = vmatpush1.msra.mxu0 0.0
        %792 = vmatprep.subr.mxu0 0.0
        %793 = vmatpush1.msra.mxu0 0.0
        %794 = vmatprep.subr.mxu0 0.0
        %795 = vmatpush1.msra.mxu0 0.0
        %796 = vmatprep.subr.mxu0 0.0
        %797 = vmatpush1.msra.mxu0 0.0
        %798 = vmatprep.subr.mxu0 0.0
        %799 = vmatpush1.msra.mxu0 0.0
        %800 = vmatprep.subr.mxu0 0.0
        %801 = vmatpush1.msra.mxu0 0.0
        %802 = vmatprep.subr.mxu0 0.0
        %803 = vmatpush1.msra.mxu0 0.0
        %804 = vmatprep.subr.mxu0 0.0
        %805 = vmatpush1.msra.mxu0 0.0
        %806 = vmatprep.subr.mxu0 0.0
        %807 = vmatpush1.msra.mxu0 0.0
        %808 = vmatprep.subr.mxu0 0.0
        %809 = vmatpush1.msra.mxu0 0.0
        %810 = vmatprep.subr.mxu0 0.0
        %811 = vmatpush1.msra.mxu0 0.0
        %812 = vmatprep.subr.mxu0 0.0
        %813 = vmatpush1.msra.mxu0 0.0
        %814 = vmatprep.subr.mxu0 0.0
        %815 = vmatpush1.msra.mxu0 0.0
        %816 = vmatprep.subr.mxu0 0.0
        %817 = vmatpush1.msra.mxu0 0.0
        %818 = vmatprep.subr.mxu0 0.0
        %819 = vmatpush1.msra.mxu0 0.0
        %820 = vmatprep.subr.mxu0 0.0
        %821 = vmatpush1.msra.mxu0 0.0
        %822 = vmatprep.subr.mxu0 0.0
        %823 = vmatpush1.msra.mxu0 0.0
        %824 = vmatprep.subr.mxu0 0.0
        %825 = vmatpush1.msra.mxu0 0.0
        %826 = vmatprep.subr.mxu0 0.0
        %827 = vmatpush1.msra.mxu0 0.0
        %828 = vmatprep.subr.mxu0 0.0
        %829 = vmatpush1.msra.mxu0 0.0
        %830 = vmatprep.subr.mxu0 0.0
        %831 = vmatpush1.msra.mxu0 0.0
        %832 = vmatprep.subr.mxu0 0.0
        %833 = vmatpush1.msra.mxu0 0.0
        %834 = vmatprep.subr.mxu0 0.0
        %835 = vmatpush1.msra.mxu0 0.0
        %836 = vmatprep.subr.mxu0 0.0
        %837 = vmatpush1.msra.mxu0 0.0
        %838 = vmatprep.subr.mxu0 0.0
        %839 = vmatpush1.msra.mxu0 0.0
        %840 = vmatprep.mubr.f32.mxu0 0.0
        %841 = vmatmul.mubr.f32.gmra.mrb[0].mxu0 %v774
        %v842 = vpop.f32.mrb[0].mxu0
        %v843 = vadd.f32 0.0, %v842
        %v844 = vpop.f32.mrb[0].mxu0
        %845 = vdwg.mxu0
        %v846 = vld [vmem:[%s516] sm:$0xff]
        %vm847 = vcmp.ne.s32.totalorder %v846, 0
        %v848 = vsel %vm847, 1, 0
        %849 = vset.pattern.permute.xlu0 0
        %850 = vperm.xlu0 %849, %v848
        %v851 = vpop.permute.xlu0 %850
        %vm852 = vcmp.eq.s32.totalorder %v851, 1
        %v853 = vsel %vm852, -1e+30, %v843
        %vm854 = vcmask 31744
        %v855 = vsel %vm854, %v853, -inf
        %v856 = vrot.slane %v855, 4
        %v857 = vmax.f32 %v855, %v856
        %v858 = vrot.slane %v857, 2
        %v859 = vmax.f32 %v857, %v858
        %v860 = vrot.slane %v859, 1
        %v861 = vmax.f32 %v859, %v860
        %v862 = vsub.f32 %v853, %v861
        %v863 = vmul.f32 %v862, 1.442695
        %v864 = vpow.pop %v863
        %v865 = vsel %vm854, %v864, 0.0
        %v866 = vrot.slane %v865, 4
        %v867 = vadd.f32 %v865, %v866
        %v868 = vrot.slane %v867, 2
        %v869 = vadd.f32 %v867, %v868
        %v870 = vrot.slane %v869, 1
        %v871 = vadd.f32 %v869, %v870
        %v872 = vrcp.pop %v871
        %v873 = vmul.f32 %v871, %v872
        %v874 = vsub.f32 2.0, %v873
        %v875 = vmul.f32 %v872, %v874
        %v876 = vmul.f32 %v864, %v875
        %v877 = vld [vmem:[%s10] sm:$0xf]
        %v879 = vsel %vm854, %v876, 0
        %vm881 = vcmask 1043456
        %v883 = vsel %vm881, %v877, 0
        %885 = vmatprep.subr.mxu0 0.0
        %886 = vmatpush1.msra.mxu0 %v883
        %887 = vmatprep.subr.mxu0 0.0
        %888 = vmatpush1.msra.mxu0 0.0
        %889 = vmatprep.subr.mxu0 0.0
        %890 = vmatpush1.msra.mxu0 0.0
        %891 = vmatprep.subr.mxu0 0.0
        %892 = vmatpush1.msra.mxu0 0.0
        %893 = vmatprep.subr.mxu0 0.0
        %894 = vmatpush1.msra.mxu0 0.0
        %895 = vmatprep.subr.mxu0 0.0
        %896 = vmatpush1.msra.mxu0 0.0
        %897 = vmatprep.subr.mxu0 0.0
        %898 = vmatpush1.msra.mxu0 0.0
        %899 = vmatprep.subr.mxu0 0.0
        %900 = vmatpush1.msra.mxu0 0.0
        %901 = vmatprep.subr.mxu0 0.0
        %902 = vmatpush1.msra.mxu0 0.0
        %903 = vmatprep.subr.mxu0 0.0
        %904 = vmatpush1.msra.mxu0 0.0
        %905 = vmatprep.subr.mxu0 0.0
        %906 = vmatpush1.msra.mxu0 0.0
        %907 = vmatprep.subr.mxu0 0.0
        %908 = vmatpush1.msra.mxu0 0.0
        %909 = vmatprep.subr.mxu0 0.0
        %910 = vmatpush1.msra.mxu0 0.0
        %911 = vmatprep.subr.mxu0 0.0
        %912 = vmatpush1.msra.mxu0 0.0
        %913 = vmatprep.subr.mxu0 0.0
        %914 = vmatpush1.msra.mxu0 0.0
        %915 = vmatprep.subr.mxu0 0.0
        %916 = vmatpush1.msra.mxu0 0.0
        %917 = vmatprep.subr.mxu0 0.0
        %918 = vmatpush1.msra.mxu0 0.0
        %919 = vmatprep.subr.mxu0 0.0
        %920 = vmatpush1.msra.mxu0 0.0
        %921 = vmatprep.subr.mxu0 0.0
        %922 = vmatpush1.msra.mxu0 0.0
        %923 = vmatprep.subr.mxu0 0.0
        %924 = vmatpush1.msra.mxu0 0.0
        %925 = vmatprep.subr.mxu0 0.0
        %926 = vmatpush1.msra.mxu0 0.0
        %927 = vmatprep.subr.mxu0 0.0
        %928 = vmatpush1.msra.mxu0 0.0
        %929 = vmatprep.subr.mxu0 0.0
        %930 = vmatpush1.msra.mxu0 0.0
        %931 = vmatprep.subr.mxu0 0.0
        %932 = vmatpush1.msra.mxu0 0.0
        %933 = vmatprep.subr.mxu0 0.0
        %934 = vmatpush1.msra.mxu0 0.0
        %935 = vmatprep.subr.mxu0 0.0
        %936 = vmatpush1.msra.mxu0 0.0
        %937 = vmatprep.subr.mxu0 0.0
        %938 = vmatpush1.msra.mxu0 0.0
        %939 = vmatprep.subr.mxu0 0.0
        %940 = vmatpush1.msra.mxu0 0.0
        %941 = vmatprep.subr.mxu0 0.0
        %942 = vmatpush1.msra.mxu0 0.0
        %943 = vmatprep.subr.mxu0 0.0
        %944 = vmatpush1.msra.mxu0 0.0
        %945 = vmatprep.subr.mxu0 0.0
        %946 = vmatpush1.msra.mxu0 0.0
        %947 = vmatprep.subr.mxu0 0.0
        %948 = vmatpush1.msra.mxu0 0.0
        %949 = vmatprep.mubr.f32.mxu0 0.0
        %950 = vmatmul.mubr.f32.gmra.mrb[0].mxu0 %v879
        %v951 = vpop.f32.mrb[0].mxu0
        %v952 = vadd.f32 0.0, %v951
        %v953 = vpop.f32.mrb[0].mxu0
        %954 = vdwg.mxu0
        %v955 = vmul.f32 %v952, %v761
        %v956 = vsel %vm524, %v955, 0.0
        %v957 = vrot.slane %v956, 4
        %v958 = vadd.f32 %v956, %v957
        %v959 = vrot.slane %v958, 2
        %v960 = vadd.f32 %v958, %v959
        %v961 = vrot.slane %v960, 1
        %v962 = vadd.f32 %v960, %v961
        %vm963 = vcmask 253952
        %964 = vst.msk [vmem:[%s505] sm:$0x1] %vm963, %v962
        %965 = vxpose.xlu0.b32.start [1/16] %v876, 128
        %966 = vxpose.xlu0.b32.cont [2/16] 0.0, 128
        %967 = vxpose.xlu0.b32.cont [3/16] 0.0, 128
        %968 = vxpose.xlu0.b32.cont [4/16] 0.0, 128
        %969 = vxpose.xlu0.b32.cont [5/16] 0.0, 128
        %970 = vxpose.xlu0.b32.cont [6/16] 0.0, 128
        %971 = vxpose.xlu0.b32.cont [7/16] 0.0, 128
        %972 = vxpose.xlu0.b32.cont [8/16] 0.0, 128
        %973 = vxpose.xlu0.b32.cont [9/16] 0.0, 128
        %974 = vxpose.xlu0.b32.cont [10/16] 0.0, 128
        %975 = vxpose.xlu0.b32.cont [11/16] 0.0, 128
        %976 = vxpose.xlu0.b32.cont [12/16] 0.0, 128
        %977 = vxpose.xlu0.b32.cont [13/16] 0.0, 128
        %978 = vxpose.xlu0.b32.cont [14/16] 0.0, 128
        %979 = vxpose.xlu0.b32.cont [15/16] 0.0, 128
        %980 = vxpose.xlu0.b32.end [16/16] 0.0, 128
        %v981 = vpop.trf.xlu0
        %v982 = vpop.trf.xlu0
        %v983 = vpop.trf.xlu0
        %v984 = vpop.trf.xlu0
        %v985 = vpop.trf.xlu0
        %v986 = vpop.trf.xlu0
        %v987 = vpop.trf.xlu0
        %v988 = vpop.trf.xlu0
        %v989 = vpop.trf.xlu0
        %v990 = vpop.trf.xlu0
        %v991 = vpop.trf.xlu0
        %v992 = vpop.trf.xlu0
        %v993 = vpop.trf.xlu0
        %v994 = vpop.trf.xlu0
        %v995 = vpop.trf.xlu0
        %v996 = vpop.trf.xlu0
        %vm997 = vcmask 60416
        %998 = vst.msk [vmem:[%s512] sm:$0xf] %vm997, %v981
        %s999 = sand.u32 %s291, 1
        %s1000 = scalar_lea.sflag [#allocation4], %s999
        %s1001 = sand.u32 %s291, 1
        %s1002 = scalar_lea.vmem [#allocation10], %s1001
        %s1003 = sand.u32 %s317, 1
        %s1004 = scalar_lea.sflag [#allocation12], %s1003
        %s1005 = sand.u32 %s317, 1
        %s1006 = smul.addr %s1005, 4
        %s1007 = scalar_lea.vmem [#allocation11], %s1006
        // Predicated region
        $region81: #{tpu_custom_call.1} parent=63 // pred_check
          %p1008 = pneg %p301
        $region82: #{tpu_custom_call.1} parent=63 // pred_check_branch
          %1010 = sbr.rel (%p1008) target = $region84
        $region83: #{tpu_custom_call.1} parent=63 // pred_region
          %s1012 = ssub.s32 16, 16
          %1013 = vsyncadd %s1000, %s1012
          %s1014 = smul.addr %s37, 16
          %s1015 = scalar_lea.hbm %s11, %s1014
          %s1017 = sshll.u32 %s1002, 4
          %s1018 = int_to_ptr.vmem [resolvable:$true] %s1017
          %1020 = dma.vmem_to_hbm [thread:$0]  %s1018, 16, %s1015, %s1000
        $region84: #{tpu_custom_call.1} parent=63 // pred_fallthru
          _
        // Predicated region
        $region85: #{tpu_custom_call.1} parent=63 // pred_check
          %p1021 = pneg %p327
        $region86: #{tpu_custom_call.1} parent=63 // pred_check_branch
          %1023 = sbr.rel (%p1021) target = $region88
        $region87: #{tpu_custom_call.1} parent=63 // pred_region
          %s1025 = ssub.s32 64, 64
          %1026 = vsyncadd %s1004, %s1025
          %s1027 = smul.addr %s37, 64
          %s1028 = scalar_lea.hbm %s12, %s1027
          %s1030 = sshll.u32 %s1007, 4
          %s1031 = int_to_ptr.vmem [resolvable:$true] %s1030
          %1033 = dma.vmem_to_hbm [thread:$0]  %s1031, 64, %s1028, %s1004
        $region88: #{tpu_custom_call.1} parent=63 // pred_fallthru
          _
      $region64: #{tpu_custom_call.1} parent=5 // pred_fallthru
        _
      %p1034 = scmp.le.s32.totalorder 2, %s32
      // Predicated region
      $region89: #{tpu_custom_call.1} parent=5 // pred_check
        %p1035 = pneg %p1034
      $region90: #{tpu_custom_call.1} parent=5 // pred_check_branch
        %1037 = sbr.rel (%p1035) target = $region92
      $region91: #{tpu_custom_call.1} parent=5 // pred_region
        %s1038 = ssub.s32 %s32, 2
        // Predicated region
        $region93: #{tpu_custom_call.1} parent=91 // pred_check
          %p1039 = pneg %p307
        $region94: #{tpu_custom_call.1} parent=91 // pred_check_branch
          %1041 = sbr.rel (%p1039) target = $region96
        $region95: #{tpu_custom_call.1} parent=91 // pred_region
          %s1042 = sand.u32 %s292, 1
          %s1043 = scalar_lea.sflag [#allocation4], %s1042
          %s1044 = sand.u32 %s292, 1
          %s1045 = scalar_lea.vmem [#allocation10], %s1044
          %1046 = dma.done %s1043, 16
        $region96: #{tpu_custom_call.1} parent=91 // pred_fallthru
          _
        // Predicated region
        $region97: #{tpu_custom_call.1} parent=91 // pred_check
          %p1047 = pneg %p333
        $region98: #{tpu_custom_call.1} parent=91 // pred_check_branch
          %1049 = sbr.rel (%p1047) target = $region100
        $region99: #{tpu_custom_call.1} parent=91 // pred_region
          %s1050 = sand.u32 %s318, 1
          %s1051 = scalar_lea.sflag [#allocation12], %s1050
          %s1052 = sand.u32 %s318, 1
          %s1053 = smul.addr %s1052, 4
          %s1054 = scalar_lea.vmem [#allocation11], %s1053
          %1055 = dma.done %s1051, 64
        $region100: #{tpu_custom_call.1} parent=91 // pred_fallthru
          _
      $region92: #{tpu_custom_call.1} parent=5 // pred_fallthru
        _
    $region6: #{tpu_custom_call.1} parent=1 // loop_footer
      %s36 = sadd.s32 1, %s32
    $region7: #{tpu_custom_call.1} parent=1 // loop_footer_branch
      %31 = sbr.rel target = $region3
    $region8: #{tpu_custom_call.1} parent=1 // loop_exit
      _
    %1056 = vsyncpa [#allocation3], 1
    %s1057 = scalar_lea.sflag [#allocation3], 1
    %1058 = vsyncpa %s1057, 1
    %1059 = vsyncpa [#allocation6], 1
    %s1060 = scalar_lea.sflag [#allocation6], 1
    %1061 = vsyncpa %s1060, 1
    %1062 = vsyncpa [#allocation9], 1
    %1063 = vsyncpa [#allocation4], 1
    %s1064 = scalar_lea.sflag [#allocation4], 1
    %1065 = vsyncpa %s1064, 1
    %1066 = vsyncpa [#allocation12], 1
    %s1067 = scalar_lea.sflag [#allocation12], 1
    %1068 = vsyncpa %s1067, 1

</llo_original>
